<compile_context>
chip_gen: v7x
topology: tpu7x:2x2x1
jax: 0.10.0
libtpu: 0.0.40
codegen_flags: <defaults>
</compile_context>

<pallas_src>
import functools

import jax
import jax.numpy as jnp
import numpy as np
from jax.experimental import pallas as pl
from jax.experimental.pallas import tpu as pltpu


def _round_up(x, m):
    return (x + m - 1) // m * m


def _postprocess_kernel(x_ref, bin_ref, score_ref, label_ref,
                        *, num_bins, num_classes):
    # x_ref:     (NT, 5, V) native dtype (f32 or bf16)
    # bin_ref:   (4, NT)    int32   per-box-coordinate bin argmax
    # score_ref: (1, NT)    float32 per-object best-class softmax prob
    # label_ref: (1, NT)    int32   per-object best-class index
    nb1 = num_bins + 1
    NT = x_ref.shape[0]

    # ---- boxes: bin argmax for positions 0..3 of each object ---------------
    # softmax is monotone, so argmax of logits == argmax of probabilities.
    colb = jax.lax.broadcasted_iota(jnp.int32, (NT, nb1), 1)   # hoisted, loop-invariant
    for p in range(4):                                         # static 4-way unroll
        xb = x_ref[:, p, :nb1]                                 # (NT, nb1) strided slice
        bmax = jnp.max(xb, axis=-1, keepdims=True)             # (NT, 1)
        idx = jnp.min(jnp.where(xb == bmax, colb, nb1), axis=-1)   # first-max index
        bin_ref[p, :] = idx.astype(jnp.int32)

    # ---- class row (position 4): best-class softmax prob + label -----------
    xcls = x_ref[:, 4, :].astype(jnp.float32)                  # (NT, V) f32
    xc = xcls[:, nb1:nb1 + num_classes]                        # (NT, nc)
    cmax = jnp.max(xc, axis=-1, keepdims=True)                 # (NT, 1)
    colc = jax.lax.broadcasted_iota(jnp.int32, (NT, num_classes), 1)
    label = jnp.min(jnp.where(xc == cmax, colc, num_classes), axis=-1)  # (NT,)

    row_max = jnp.max(xcls, axis=-1, keepdims=True)            # (NT, 1)
    denom = jnp.sum(jnp.exp(xcls - row_max), axis=-1, keepdims=True)
    score = jnp.exp(cmax - row_max) / denom                    # exact divide (tiny)

    score_ref[0, :] = score[:, 0]
    label_ref[0, :] = label.astype(jnp.int32)


def postprocess_pallas(pred_seq_logits, scale_fct, num_bins, num_classes):
    """pred_seq_logits: (B, S, V) float32/bfloat16; scale_fct: (B, 4) float32.

    Returns a list of {'scores', 'labels', 'boxes'} dicts (one per image),
    matching the torch PostProcess.forward output format.
    """
    B, S, V = pred_seq_logits.shape
    if S < 5:
        # TODO(synk): ragged per-image sequence lengths from the torch module
        # are not supported; all images share S (S < 5 -> empty dicts).
        return [dict() for _ in range(B)]

    N = S // 5
    # Free metadata reshape: each object's 5 token rows become an aligned
    # (5, V) tile group so the class row is a static strided slice in-kernel.
    x = pred_seq_logits[:, :N * 5, :].reshape(B, N, 5, V)

    if N >= 128:
        NT = 128                         # keeps the input block <=~8 MiB/buffer
        N_pad = _round_up(N, NT)
        if N_pad != N:
            # Pad objects with zeros; padded results are sliced off below.
            x = jnp.pad(x, ((0, 0), (0, N_pad - N), (0, 0), (0, 0)))
    else:
        NT = N                           # tiny input: one full-dim tile, no pad
        N_pad = N

    grid = (B, N_pad // NT)

    # Derive the scoped-VMEM budget from the real block footprint (the 5-axis
    # pads to 8 sublanes for f32 / 16 for bf16), with headroom for temporaries;
    # never exceed ~48 MiB (v7x physical VMEM is 64 MiB).
    itemsize = jnp.dtype(pred_seq_logits.dtype).itemsize
    sublane = {4: 8, 2: 16, 1: 32}.get(itemsize, 8)
    in_block_bytes = NT * _round_up(5, sublane) * _round_up(V, 128) * itemsize
    vmem_limit = int(min(48 * 2**20, max(32 * 2**20, 2 * in_block_bytes + 8 * 2**20)))

    kernel = functools.partial(_postprocess_kernel,
                               num_bins=num_bins, num_classes=num_classes)

    bin_out, scores, labels = pl.pallas_call(
        kernel,
        out_shape=(
            jax.ShapeDtypeStruct((B, 4, N_pad), jnp.int32),    # per-coord bin argmax
            jax.ShapeDtypeStruct((B, 1, N_pad), jnp.float32),  # per-object score
            jax.ShapeDtypeStruct((B, 1, N_pad), jnp.int32),    # per-object label
        ),
        grid_spec=pltpu.PrefetchScalarGridSpec(
            num_scalar_prefetch=0,
            grid=grid,
            in_specs=[
                pl.BlockSpec((None, NT, 5, V), lambda b, s: (b, s, 0, 0)),
            ],
            out_specs=(
                pl.BlockSpec((None, 4, NT), lambda b, s: (b, 0, s)),
                pl.BlockSpec((None, 1, NT), lambda b, s: (b, 0, s)),
                pl.BlockSpec((None, 1, NT), lambda b, s: (b, 0, s)),
            ),
        ),
        compiler_params=pltpu.CompilerParams(
            dimension_semantics=("parallel", "parallel"),
            vmem_limit_bytes=vmem_limit,
        ),
    )(x)

    # Tiny post-kernel glue in plain JAX: drop padding, regroup, scale boxes.
    scores = scores[:, 0, :N]                                   # (B, N)
    labels = labels[:, 0, :N]                                   # (B, N)
    box_idx = jnp.transpose(bin_out[:, :, :N], (0, 2, 1)).astype(jnp.float32)  # (B, N, 4)
    boxes = box_idx * 1333.0 / num_bins                         # same op order as torch
    boxes = boxes * scale_fct[:, None, :]                       # (B, N, 4)

    results = []
    for b in range(B):
        results.append({"scores": scores[b], "labels": labels[b], "boxes": boxes[b]})
    return results


def postprocess_reference(pred_seq_logits, scale_fct, num_bins, num_classes):
    probs = jax.nn.softmax(pred_seq_logits.astype(jnp.float32), axis=-1)
    B, S, V = probs.shape
    N = S // 5
    p = probs[:, :N * 5].reshape(B, N, 5, V)
    pb = p[:, :, :4, :num_bins + 1]
    pc = p[:, :, 4, num_bins + 1:num_bins + 1 + num_classes]
    scores = jnp.max(pc, axis=-1)
    labels = jnp.argmax(pc, axis=-1)
    boxes = jnp.argmax(pb, axis=-1).astype(jnp.float32) * 1333.0 / num_bins
    boxes = boxes * scale_fct[:, None, :]
    return scores, labels, boxes


def _check(results, pred_seq_logits, scale_fct, num_bins, num_classes,
           score_rtol=1e-5):
    ref_scores, ref_labels, ref_boxes = postprocess_reference(
        pred_seq_logits, scale_fct, num_bins, num_classes)
    for b in range(len(results)):
        np.testing.assert_allclose(np.asarray(results[b]["scores"]),
                                   np.asarray(ref_scores[b]),
                                   rtol=score_rtol, atol=1e-7)
        np.testing.assert_array_equal(np.asarray(results[b]["labels"]),
                                      np.asarray(ref_labels[b]))
        np.testing.assert_allclose(np.asarray(results[b]["boxes"]),
                                   np.asarray(ref_boxes[b]),
                                   rtol=1e-6, atol=1e-4)


if __name__ == "__main__":
    num_bins = 99                      # bin tokens 0..99 -> 100 bins
    num_classes = 20
    V = 128                            # 100 bins + 20 classes + 8 extra tokens
    key = jax.random.PRNGKey(0)
    k1, k2 = jax.random.split(key)

    # targets: per-image orig_size / size = (h, w)
    orig_sizes = jnp.array([[480.0, 640.0], [512.0, 384.0]], dtype=jnp.float32)
    input_sizes = jnp.array([[320.0, 320.0], [256.0, 256.0]], dtype=jnp.float32)
    ori_h, ori_w = orig_sizes[:, 0], orig_sizes[:, 1]
    inp_h, inp_w = input_sizes[:, 0], input_sizes[:, 1]
    scale_fct = jnp.stack([ori_w / inp_w, ori_h / inp_h,
                           ori_w / inp_w, ori_h / inp_h], axis=1)   # (B, 4)

    # Case 1: small sequence (N=8 objects) -> single full-dim tile path.
    B, S = 2, 40
    logits_small = jax.random.normal(k1, (B, S, V), dtype=jnp.float32)
    res = postprocess_pallas(logits_small, scale_fct, num_bins, num_classes)
    jax.block_until_ready(res)
    _check(res, logits_small, scale_fct, num_bins, num_classes)

    # Case 2: larger sequence (N=130 objects) -> NT=128 tiling + padding to 256,
    # grid (2, 2) so both v7x TensorCores get work.
    B, S = 2, 650
    logits_big = jax.random.normal(k2, (B, S, V), dtype=jnp.float32)
    res = postprocess_pallas(logits_big, scale_fct, num_bins, num_classes)
    jax.block_until_ready(res)
    _check(res, logits_big, scale_fct, num_bins, num_classes)

    # Case 3: bf16 logits (halves HBM bytes; kernel is HBM-read bound).
    logits_bf16 = logits_big.astype(jnp.bfloat16)
    res = postprocess_pallas(logits_bf16, scale_fct, num_bins, num_classes)
    jax.block_until_ready(res)
    _check(res, logits_bf16, scale_fct, num_bins, num_classes, score_rtol=1e-4)

    print("KERNEL_OK")
</pallas_src>

<mosaic_0001>
module attributes {stable_mosaic.version = 11 : i64} {
  func.func @_postprocess_kernel(%arg0: i32, %arg1: i32, %arg2: memref<1x8x5x128xf32, #tpu.memory_space<vmem>>, %arg3: memref<1x4x8xi32, #tpu.memory_space<vmem>>, %arg4: memref<1x1x8xf32, #tpu.memory_space<vmem>>, %arg5: memref<1x1x8xi32, #tpu.memory_space<vmem>>) attributes {dimension_semantics = [#tpu.dimension_semantics<parallel>, #tpu.dimension_semantics<parallel>], iteration_bounds = array<i64: 2, 1>, scalar_prefetch = 0 : i64, scratch_operands = 0 : i64, tpu.core_type = #tpu.core_type<tc>, window_params = [{transform_indices = @transform_0, window_bounds = array<i64: 1, 8, 5, 128>}, {transform_indices = @transform_1, window_bounds = array<i64: 1, 4, 8>}, {transform_indices = @transform_2, window_bounds = array<i64: 1, 1, 8>}, {transform_indices = @transform_3, window_bounds = array<i64: 1, 1, 8>}]} {
    %0 = tpu.iota {dimensions = array<i32: 1>} : vector<8x100xi32>
    %c0 = arith.constant 0 : index
    %c0_0 = arith.constant 0 : index
    %c0_1 = arith.constant 0 : index
    %c0_2 = arith.constant 0 : index
    %1 = vector.load %arg2[%c0, %c0_0, %c0_1, %c0_2] : memref<1x8x5x128xf32, #tpu.memory_space<vmem>>, vector<1x8x1x100xf32>
    %2 = vector.shape_cast %1 : vector<1x8x1x100xf32> to vector<8x100xf32>
    %cst = arith.constant dense<0xFF800000> : vector<8xf32>
    %3 = vector.multi_reduction <maximumf>, %2, %cst [1] : vector<8x100xf32> to vector<8xf32>
    %4 = vector.shape_cast %3 : vector<8xf32> to vector<8x1xf32>
    %5 = vector.broadcast %4 : vector<8x1xf32> to vector<8x100xf32>
    %6 = arith.cmpf oeq, %2, %5 : vector<8x100xf32>
    %c100_i32 = arith.constant 100 : i32
    %7 = vector.broadcast %c100_i32 : i32 to vector<8x100xi32>
    %8 = arith.select %6, %0, %7 : vector<8x100xi1>, vector<8x100xi32>
    %cst_3 = arith.constant dense<2147483647> : vector<8xi32>
    %9 = vector.multi_reduction <minsi>, %8, %cst_3 [1] : vector<8x100xi32> to vector<8xi32>
    %c0_4 = arith.constant 0 : index
    %c0_5 = arith.constant 0 : index
    %c0_6 = arith.constant 0 : index
    %10 = vector.load %arg3[%c0_4, %c0_5, %c0_6] : memref<1x4x8xi32, #tpu.memory_space<vmem>>, vector<1x1x8xi32>
    %11 = vector.shape_cast %10 : vector<1x1x8xi32> to vector<8xi32>
    %12 = vector.shape_cast %9 : vector<8xi32> to vector<1x1x8xi32>
    tpu.vector_store %arg3[%c0_4, %c0_5, %c0_6], %12 {strides = array<i32>} : memref<1x4x8xi32, #tpu.memory_space<vmem>>, vector<1x1x8xi32>,
    %c0_7 = arith.constant 0 : index
    %c0_8 = arith.constant 0 : index
    %c1 = arith.constant 1 : index
    %c0_9 = arith.constant 0 : index
    %13 = vector.load %arg2[%c0_7, %c0_8, %c1, %c0_9] : memref<1x8x5x128xf32, #tpu.memory_space<vmem>>, vector<1x8x1x100xf32>
    %14 = vector.shape_cast %13 : vector<1x8x1x100xf32> to vector<8x100xf32>
    %cst_10 = arith.constant dense<0xFF800000> : vector<8xf32>
    %15 = vector.multi_reduction <maximumf>, %14, %cst_10 [1] : vector<8x100xf32> to vector<8xf32>
    %16 = vector.shape_cast %15 : vector<8xf32> to vector<8x1xf32>
    %17 = vector.broadcast %16 : vector<8x1xf32> to vector<8x100xf32>
    %18 = arith.cmpf oeq, %14, %17 : vector<8x100xf32>
    %c100_i32_11 = arith.constant 100 : i32
    %19 = vector.broadcast %c100_i32_11 : i32 to vector<8x100xi32>
    %20 = arith.select %18, %0, %19 : vector<8x100xi1>, vector<8x100xi32>
    %cst_12 = arith.constant dense<2147483647> : vector<8xi32>
    %21 = vector.multi_reduction <minsi>, %20, %cst_12 [1] : vector<8x100xi32> to vector<8xi32>
    %c0_13 = arith.constant 0 : index
    %c1_14 = arith.constant 1 : index
    %c0_15 = arith.constant 0 : index
    %22 = vector.load %arg3[%c0_13, %c1_14, %c0_15] : memref<1x4x8xi32, #tpu.memory_space<vmem>>, vector<1x1x8xi32>
    %23 = vector.shape_cast %22 : vector<1x1x8xi32> to vector<8xi32>
    %24 = vector.shape_cast %21 : vector<8xi32> to vector<1x1x8xi32>
    tpu.vector_store %arg3[%c0_13, %c1_14, %c0_15], %24 {strides = array<i32>} : memref<1x4x8xi32, #tpu.memory_space<vmem>>, vector<1x1x8xi32>,
    %c0_16 = arith.constant 0 : index
    %c0_17 = arith.constant 0 : index
    %c2 = arith.constant 2 : index
    %c0_18 = arith.constant 0 : index
    %25 = vector.load %arg2[%c0_16, %c0_17, %c2, %c0_18] : memref<1x8x5x128xf32, #tpu.memory_space<vmem>>, vector<1x8x1x100xf32>
    %26 = vector.shape_cast %25 : vector<1x8x1x100xf32> to vector<8x100xf32>
    %cst_19 = arith.constant dense<0xFF800000> : vector<8xf32>
    %27 = vector.multi_reduction <maximumf>, %26, %cst_19 [1] : vector<8x100xf32> to vector<8xf32>
    %28 = vector.shape_cast %27 : vector<8xf32> to vector<8x1xf32>
    %29 = vector.broadcast %28 : vector<8x1xf32> to vector<8x100xf32>
    %30 = arith.cmpf oeq, %26, %29 : vector<8x100xf32>
    %c100_i32_20 = arith.constant 100 : i32
    %31 = vector.broadcast %c100_i32_20 : i32 to vector<8x100xi32>
    %32 = arith.select %30, %0, %31 : vector<8x100xi1>, vector<8x100xi32>
    %cst_21 = arith.constant dense<2147483647> : vector<8xi32>
    %33 = vector.multi_reduction <minsi>, %32, %cst_21 [1] : vector<8x100xi32> to vector<8xi32>
    %c0_22 = arith.constant 0 : index
    %c2_23 = arith.constant 2 : index
    %c0_24 = arith.constant 0 : index
    %34 = vector.load %arg3[%c0_22, %c2_23, %c0_24] : memref<1x4x8xi32, #tpu.memory_space<vmem>>, vector<1x1x8xi32>
    %35 = vector.shape_cast %34 : vector<1x1x8xi32> to vector<8xi32>
    %36 = vector.shape_cast %33 : vector<8xi32> to vector<1x1x8xi32>
    tpu.vector_store %arg3[%c0_22, %c2_23, %c0_24], %36 {strides = array<i32>} : memref<1x4x8xi32, #tpu.memory_space<vmem>>, vector<1x1x8xi32>,
    %c0_25 = arith.constant 0 : index
    %c0_26 = arith.constant 0 : index
    %c3 = arith.constant 3 : index
    %c0_27 = arith.constant 0 : index
    %37 = vector.load %arg2[%c0_25, %c0_26, %c3, %c0_27] : memref<1x8x5x128xf32, #tpu.memory_space<vmem>>, vector<1x8x1x100xf32>
    %38 = vector.shape_cast %37 : vector<1x8x1x100xf32> to vector<8x100xf32>
    %cst_28 = arith.constant dense<0xFF800000> : vector<8xf32>
    %39 = vector.multi_reduction <maximumf>, %38, %cst_28 [1] : vector<8x100xf32> to vector<8xf32>
    %40 = vector.shape_cast %39 : vector<8xf32> to vector<8x1xf32>
    %41 = vector.broadcast %40 : vector<8x1xf32> to vector<8x100xf32>
    %42 = arith.cmpf oeq, %38, %41 : vector<8x100xf32>
    %c100_i32_29 = arith.constant 100 : i32
    %43 = vector.broadcast %c100_i32_29 : i32 to vector<8x100xi32>
    %44 = arith.select %42, %0, %43 : vector<8x100xi1>, vector<8x100xi32>
    %cst_30 = arith.constant dense<2147483647> : vector<8xi32>
    %45 = vector.multi_reduction <minsi>, %44, %cst_30 [1] : vector<8x100xi32> to vector<8xi32>
    %c0_31 = arith.constant 0 : index
    %c3_32 = arith.constant 3 : index
    %c0_33 = arith.constant 0 : index
    %46 = vector.load %arg3[%c0_31, %c3_32, %c0_33] : memref<1x4x8xi32, #tpu.memory_space<vmem>>, vector<1x1x8xi32>
    %47 = vector.shape_cast %46 : vector<1x1x8xi32> to vector<8xi32>
    %48 = vector.shape_cast %45 : vector<8xi32> to vector<1x1x8xi32>
    tpu.vector_store %arg3[%c0_31, %c3_32, %c0_33], %48 {strides = array<i32>} : memref<1x4x8xi32, #tpu.memory_space<vmem>>, vector<1x1x8xi32>,
    %c0_34 = arith.constant 0 : index
    %c0_35 = arith.constant 0 : index
    %c4 = arith.constant 4 : index
    %c0_36 = arith.constant 0 : index
    %49 = vector.load %arg2[%c0_34, %c0_35, %c4, %c0_36] : memref<1x8x5x128xf32, #tpu.memory_space<vmem>>, vector<1x8x1x128xf32>
    %50 = vector.shape_cast %49 : vector<1x8x1x128xf32> to vector<8x128xf32>
    %51 = vector.extract_strided_slice %50 {offsets = [0, 100], sizes = [8, 20], strides = [1, 1]} : vector<8x128xf32> to vector<8x20xf32>
    %cst_37 = arith.constant dense<0xFF800000> : vector<8xf32>
    %52 = vector.multi_reduction <maximumf>, %51, %cst_37 [1] : vector<8x20xf32> to vector<8xf32>
    %53 = vector.shape_cast %52 : vector<8xf32> to vector<8x1xf32>
    %54 = tpu.iota {dimensions = array<i32: 1>} : vector<8x20xi32>
    %55 = vector.broadcast %53 : vector<8x1xf32> to vector<8x20xf32>
    %56 = arith.cmpf oeq, %51, %55 : vector<8x20xf32>
    %c20_i32 = arith.constant 20 : i32
    %57 = vector.broadcast %c20_i32 : i32 to vector<8x20xi32>
    %58 = arith.select %56, %54, %57 : vector<8x20xi1>, vector<8x20xi32>
    %cst_38 = arith.constant dense<2147483647> : vector<8xi32>
    %59 = vector.multi_reduction <minsi>, %58, %cst_38 [1] : vector<8x20xi32> to vector<8xi32>
    %cst_39 = arith.constant dense<0xFF800000> : vector<8xf32>
    %60 = vector.multi_reduction <maximumf>, %50, %cst_39 [1] : vector<8x128xf32> to vector<8xf32>
    %61 = vector.shape_cast %60 : vector<8xf32> to vector<8x1xf32>
    %62 = vector.broadcast %61 : vector<8x1xf32> to vector<8x128xf32>
    %63 = arith.subf %50, %62 : vector<8x128xf32>
    %64 = math.exp %63 : vector<8x128xf32>
    %cst_40 = arith.constant dense<0.000000e+00> : vector<8xf32>
    %65 = vector.multi_reduction <add>, %64, %cst_40 [1] : vector<8x128xf32> to vector<8xf32>
    %66 = vector.shape_cast %65 : vector<8xf32> to vector<8x1xf32>
    %67 = arith.subf %53, %61 : vector<8x1xf32>
    %68 = math.exp %67 : vector<8x1xf32>
    %69 = arith.divf %68, %66 : vector<8x1xf32>
    %70 = vector.shape_cast %69 : vector<8x1xf32> to vector<8xf32>
    %c0_41 = arith.constant 0 : index
    %c0_42 = arith.constant 0 : index
    %c0_43 = arith.constant 0 : index
    %71 = vector.load %arg4[%c0_41, %c0_42, %c0_43] : memref<1x1x8xf32, #tpu.memory_space<vmem>>, vector<1x1x8xf32>
    %72 = vector.shape_cast %71 : vector<1x1x8xf32> to vector<8xf32>
    %73 = vector.shape_cast %70 : vector<8xf32> to vector<1x1x8xf32>
    tpu.vector_store %arg4[%c0_41, %c0_42, %c0_43], %73 {strides = array<i32>} : memref<1x1x8xf32, #tpu.memory_space<vmem>>, vector<1x1x8xf32>,
    %c0_44 = arith.constant 0 : index
    %c0_45 = arith.constant 0 : index
    %c0_46 = arith.constant 0 : index
    %74 = vector.load %arg5[%c0_44, %c0_45, %c0_46] : memref<1x1x8xi32, #tpu.memory_space<vmem>>, vector<1x1x8xi32>
    %75 = vector.shape_cast %74 : vector<1x1x8xi32> to vector<8xi32>
    %76 = vector.shape_cast %59 : vector<8xi32> to vector<1x1x8xi32>
    tpu.vector_store %arg5[%c0_44, %c0_45, %c0_46], %76 {strides = array<i32>} : memref<1x1x8xi32, #tpu.memory_space<vmem>>, vector<1x1x8xi32>,
    return
  }
  func.func @transform_0(%arg0: i32, %arg1: i32) -> (i32, i32, i32, i32) {
    %c0_i32 = arith.constant 0 : i32
    %c0_i32_0 = arith.constant 0 : i32
    %c0_i32_1 = arith.constant 0 : i32
    return %arg0, %arg1, %c0_i32, %c0_i32_0 : i32, i32, i32, i32
  }
  func.func @transform_1(%arg0: i32, %arg1: i32) -> (i32, i32, i32) {
    %c0_i32 = arith.constant 0 : i32
    %c0_i32_0 = arith.constant 0 : i32
    return %arg0, %c0_i32, %arg1 : i32, i32, i32
  }
  func.func @transform_2(%arg0: i32, %arg1: i32) -> (i32, i32, i32) {
    %c0_i32 = arith.constant 0 : i32
    %c0_i32_0 = arith.constant 0 : i32
    return %arg0, %c0_i32, %arg1 : i32, i32, i32
  }
  func.func @transform_3(%arg0: i32, %arg1: i32) -> (i32, i32, i32) {
    %c0_i32 = arith.constant 0 : i32
    %c0_i32_0 = arith.constant 0 : i32
    return %arg0, %c0_i32, %arg1 : i32, i32, i32
  }
}

</mosaic_0001>

<llo_original>
// kernel: tpu_custom_call.1
$region0: #{tpu_custom_call.1}
  #allocation0 [shape = 'u32[]', space=smem, size = 0x4, offset = 0x4, fixed_abs, tag = 'smem constant byte address 0x4 - core index']
  #allocation1 [shape = 'u32[144,128]{1,0:T(1,128)}', space=vmem, size = 0x12000, scoped, tag = 'internal scratch']
  %s0 = inlined_call_operand.vmem [shape: f32[2,8,5,128], index: 0, kind: input, shape index: {}]
  %s1 = inlined_call_operand.hbm [shape: s32[2,4,8], index: 1, kind: output, shape index: {0}]
  %s2 = inlined_call_operand.hbm [shape: f32[2,1,8], index: 2, kind: output, shape index: {1}]
  %s3 = inlined_call_operand.hbm [shape: s32[2,1,8], index: 3, kind: output, shape index: {2}]
  %4 = xla_tuple %s1, %s2, %s3
  %s5 = sld [smem:[#allocation0]]
  $region53: #{tpu_custom_call.1} parent=0
    _
  %s7 = ssub.s32 1, %s5
  %s8 = scalar_select 0, %s7, %s5
  $region1: #{tpu_custom_call.1} parent=0
    #allocation2 [shape = 'u8[4096]{0}', space=vmem, size = 0x1000, scoped, tag = 'output window, operand 0']
    #allocation3 [shape = 's32[2]{0}', space=sflag, size = 0x8, scoped, tag = 'scoped memory for tpu_custom_call.1']
    #allocation4 [shape = 'u8[1024]{0}', space=vmem, size = 0x400, scoped, tag = 'output window, operand 1']
    #allocation5 [shape = 's32[2]{0}', space=sflag, size = 0x8, scoped, tag = 'scoped memory for tpu_custom_call.1']
    #allocation6 [shape = 'u8[1024]{0}', space=vmem, size = 0x400, scoped, tag = 'output window, operand 2']
    %9 = vsyncpa [#allocation3], 0
    %s10 = scalar_lea.sflag [#allocation3], 1
    %11 = vsyncpa %s10, 0
    %12 = vsyncpa [#allocation5], 0
    %s13 = scalar_lea.sflag [#allocation5], 1
    %14 = vsyncpa %s13, 0
    loop: start=0, step=1, limit=4
    $region2: #{tpu_custom_call.1} parent=1 // loop_pre_header
      _
    $region3: #{tpu_custom_call.1} parent=1 // loop_header
      %s16 = sphi 0, %s20
      %p17 = scmp.ge.s32.totalorder %s16, 4
      %s23 = sphi 0, %s35
      %s24 = sphi 0, %s31
      %s25 = sphi 0, %s23
      %s26 = sphi 0, %s24
      %s27 = sphi 0, %s25
      %s28 = sphi 0, %s26
      %s40 = sphi 0, %s42
      %s43 = sphi 0, %s40
      %s44 = sphi 0, %s43
      %s60 = sphi 0, %s44
      %s68 = sphi 0, %s70
      %s71 = sphi 0, %s68
      %s72 = sphi 0, %s71
      %s88 = sphi 0, %s72
      %s96 = sphi 0, %s98
      %s99 = sphi 0, %s96
      %s100 = sphi 0, %s99
      %s116 = sphi 0, %s100
      %s124 = sphi 0, %s126
      %s127 = sphi 0, %s124
      %s128 = sphi 0, %s127
      %s144 = sphi 0, %s128
    $region4: #{tpu_custom_call.1} parent=1 // loop_header_branch
      %19 = sbr.rel (%p17) target = $region8
    $region5: #{tpu_custom_call.1} parent=1 // loop_body
      %s21 = ssub.s32 %s16, 1
      %s22 = ssub.s32 %s16, 2
      %s29 = sadd.s32 1, %s24
      %p30 = scmp.ge.s32.totalorder %s29, 1
      %s31 = scalar_select %p30, 0, %s29
      %s32 = sadd.s32 1, %s23
      %s33 = scalar_select %p30, %s32, %s23
      %p34 = scmp.ge.s32.totalorder %s33, 2
      %s35 = scalar_select %p34, 0, %s33
      %s36 = ssub.s32 %s23, %s35
      %s37 = ssub.s32 %s24, %s31
      %s38 = sor.u32 %s36, %s37
      %p39 = scmp.eq.s32.totalorder %s38, 0
      %s41 = sadd.s32 %s40, 1
      %s42 = scalar_select %p39, %s40, %s41
      %p45 = pneg %p39
      %p46 = scmp.eq.s32.totalorder %s16, 1
      %p47 = por %p45, %p46
      %p48 = scmp.ne.s32.totalorder %s40, %s43
      %p49 = scmp.eq.s32.totalorder %s16, 0
      %p50 = por %p48, %p49
      %p51 = scmp.ne.s32.totalorder %s40, %s43
      %p52 = scmp.eq.s32.totalorder %s21, 1
      %p53 = por %p51, %p52
      %p54 = scmp.ne.s32.totalorder %s43, %s44
      %p55 = scmp.eq.s32.totalorder %s21, 0
      %p56 = por %p54, %p55
      %p57 = scmp.ne.s32.totalorder %s43, %s44
      %p58 = scmp.eq.s32.totalorder %s22, 1
      %p59 = por %p57, %p58
      %p61 = scmp.ne.s32.totalorder %s44, %s60
      %p62 = scmp.eq.s32.totalorder %s22, 0
      %p63 = por %p61, %p62
      %s64 = ssub.s32 %s23, %s35
      %s65 = ssub.s32 %s24, %s31
      %s66 = sor.u32 %s64, %s65
      %p67 = scmp.eq.s32.totalorder %s66, 0
      %s69 = sadd.s32 %s68, 1
      %s70 = scalar_select %p67, %s68, %s69
      %p73 = pneg %p67
      %p74 = scmp.eq.s32.totalorder %s16, 1
      %p75 = por %p73, %p74
      %p76 = scmp.ne.s32.totalorder %s68, %s71
      %p77 = scmp.eq.s32.totalorder %s16, 0
      %p78 = por %p76, %p77
      %p79 = scmp.ne.s32.totalorder %s68, %s71
      %p80 = scmp.eq.s32.totalorder %s21, 1
      %p81 = por %p79, %p80
      %p82 = scmp.ne.s32.totalorder %s71, %s72
      %p83 = scmp.eq.s32.totalorder %s21, 0
      %p84 = por %p82, %p83
      %p85 = scmp.ne.s32.totalorder %s71, %s72
      %p86 = scmp.eq.s32.totalorder %s22, 1
      %p87 = por %p85, %p86
      %p89 = scmp.ne.s32.totalorder %s72, %s88
      %p90 = scmp.eq.s32.totalorder %s22, 0
      %p91 = por %p89, %p90
      %s92 = ssub.s32 %s23, %s35
      %s93 = ssub.s32 %s24, %s31
      %s94 = sor.u32 %s92, %s93
      %p95 = scmp.eq.s32.totalorder %s94, 0
      %s97 = sadd.s32 %s96, 1
      %s98 = scalar_select %p95, %s96, %s97
      %p101 = pneg %p95
      %p102 = scmp.eq.s32.totalorder %s16, 1
      %p103 = por %p101, %p102
      %p104 = scmp.ne.s32.totalorder %s96, %s99
      %p105 = scmp.eq.s32.totalorder %s16, 0
      %p106 = por %p104, %p105
      %p107 = scmp.ne.s32.totalorder %s96, %s99
      %p108 = scmp.eq.s32.totalorder %s21, 1
      %p109 = por %p107, %p108
      %p110 = scmp.ne.s32.totalorder %s99, %s100
      %p111 = scmp.eq.s32.totalorder %s21, 0
      %p112 = por %p110, %p111
      %p113 = scmp.ne.s32.totalorder %s99, %s100
      %p114 = scmp.eq.s32.totalorder %s22, 1
      %p115 = por %p113, %p114
      %p117 = scmp.ne.s32.totalorder %s100, %s116
      %p118 = scmp.eq.s32.totalorder %s22, 0
      %p119 = por %p117, %p118
      %s120 = ssub.s32 %s23, %s35
      %s121 = ssub.s32 %s24, %s31
      %s122 = sor.u32 %s120, %s121
      %p123 = scmp.eq.s32.totalorder %s122, 0
      %s125 = sadd.s32 %s124, 1
      %s126 = scalar_select %p123, %s124, %s125
      %p129 = pneg %p123
      %p130 = scmp.eq.s32.totalorder %s16, 1
      %p131 = por %p129, %p130
      %p132 = scmp.ne.s32.totalorder %s124, %s127
      %p133 = scmp.eq.s32.totalorder %s16, 0
      %p134 = por %p132, %p133
      %p135 = scmp.ne.s32.totalorder %s124, %s127
      %p136 = scmp.eq.s32.totalorder %s21, 1
      %p137 = por %p135, %p136
      %p138 = scmp.ne.s32.totalorder %s127, %s128
      %p139 = scmp.eq.s32.totalorder %s21, 0
      %p140 = por %p138, %p139
      %p141 = scmp.ne.s32.totalorder %s127, %s128
      %p142 = scmp.eq.s32.totalorder %s22, 1
      %p143 = por %p141, %p142
      %p145 = scmp.ne.s32.totalorder %s128, %s144
      %p146 = scmp.eq.s32.totalorder %s22, 0
      %p147 = por %p145, %p146
      %p148 = scmp.le.s32.totalorder 1, %s16
      %p149 = scmp.lt.s32.totalorder %s16, 3
      %p150 = pnand %p148, %p149
      %p151 = pneg %p150
      // Predicated region
      $region9: #{tpu_custom_call.1} parent=5 // pred_check
        _
      $region10: #{tpu_custom_call.1} parent=5 // pred_check_branch
        %153 = sbr.rel (%p150) target = $region12
      $region11: #{tpu_custom_call.1} parent=5 // pred_region
        %s154 = ssub.s32 %s16, 1
      $region12: #{tpu_custom_call.1} parent=5 // pred_fallthru
        _
      %p155 = scmp.lt.s32.totalorder %s16, 2
      // Predicated region
      $region13: #{tpu_custom_call.1} parent=5 // pred_check
        %p156 = pneg %p155
      $region14: #{tpu_custom_call.1} parent=5 // pred_check_branch
        %158 = sbr.rel (%p156) target = $region16
      $region15: #{tpu_custom_call.1} parent=5 // pred_region
        // Predicated region
        $region17: #{tpu_custom_call.1} parent=15 // pred_check
          %p159 = pneg %p50
        $region18: #{tpu_custom_call.1} parent=15 // pred_check_branch
          %161 = sbr.rel (%p159) target = $region20
        $region19: #{tpu_custom_call.1} parent=15 // pred_region
          %s162 = smul.u32 8, %s24
          %p163 = scmp.lt.s32.totalorder %s23, 1
          %s164 = scalar_select %p163, %s23, 1
          %p165 = scmp.lt.s32.totalorder %s162, 7
          %s166 = scalar_select %p165, %s162, 7
          %s167 = smul.addr %s164, 8
          %s168 = sadd.s32 %s166, %s167
          %s169 = smul.addr %s168, 8
          %s170 = scalar_lea.vmem %s0, %s169
          %s171 = smul.u32 8, %s24
        $region20: #{tpu_custom_call.1} parent=15 // pred_fallthru
          _
      $region16: #{tpu_custom_call.1} parent=5 // pred_fallthru
        _
      %p172 = scmp.le.s32.totalorder 1, %s16
      %p173 = scmp.lt.s32.totalorder %s16, 3
      %p174 = pnand %p172, %p173
      %p175 = pneg %p174
      // Predicated region
      $region21: #{tpu_custom_call.1} parent=5 // pred_check
        _
      $region22: #{tpu_custom_call.1} parent=5 // pred_check_branch
        %177 = sbr.rel (%p174) target = $region24
      $region23: #{tpu_custom_call.1} parent=5 // pred_region
        %s178 = ssub.s32 %s16, 1
        %s179 = smul.u32 8, %s26
        %p180 = scmp.lt.s32.totalorder %s25, 1
        %s181 = scalar_select %p180, %s25, 1
        %p182 = scmp.lt.s32.totalorder %s179, 7
        %s183 = scalar_select %p182, %s179, 7
        %s184 = smul.addr %s181, 8
        %s185 = sadd.s32 %s183, %s184
        %s186 = smul.addr %s185, 8
        %s187 = scalar_lea.vmem %s0, %s186
        %p188 = pneg %p56
        %p189 = pneg %p53
        %p190 = pneg %p84
        %p191 = pneg %p81
        %s192 = sand.u32 %s71, 1
        %s193 = scalar_lea.sflag [#allocation3], %s192
        %s194 = sand.u32 %s71, 1
        %s195 = smul.addr %s194, 4
        %s196 = scalar_lea.vmem [#allocation2], %s195
        %p197 = pneg %p112
        %p198 = pneg %p109
        %s199 = sand.u32 %s21, 1
        %s200 = scalar_lea.sflag [#allocation5], %s199
        %s201 = sand.u32 %s99, 1
        %s202 = scalar_lea.vmem [#allocation4], %s201
        %p203 = pneg %p140
        %p204 = pneg %p137
        %s205 = sand.u32 %s21, 1
        %s206 = scalar_lea.sflag [#allocation5], %s205
        %s207 = sand.u32 %s127, 1
        %s208 = scalar_lea.vmem [#allocation6], %s207
        %s209 = smul.u32 8, %s26
        %p210 = scmp.lt.s32.totalorder %s25, 1
        %s211 = scalar_select %p210, %s25, 1
        %p212 = scmp.lt.s32.totalorder %s209, 7
        %s213 = scalar_select %p212, %s209, 7
        %s214 = smul.addr %s211, 8
        %s215 = sadd.s32 %s213, %s214
        %s216 = smul.addr %s215, 8
        %s217 = scalar_lea.vmem %s0, %s216
        %s218 = smul.u32 8, %s26
        %v219 = vlaneseq
        %v220 = vand.u32 %v219, 127
        %v221 = vld [vmem:[%s217] sm:$0x1]
        %v222 = vld [vmem:[%s217 + $0x8] sm:$0x1]
        %v223 = vld [vmem:[%s217 + $0x10] sm:$0x1]
        %v224 = vld [vmem:[%s217 + $0x18] sm:$0x1]
        %v225 = vld [vmem:[%s217 + $0x20] sm:$0x1]
        %v226 = vld [vmem:[%s217 + $0x28] sm:$0x1]
        %v227 = vld [vmem:[%s217 + $0x30] sm:$0x1]
        %v228 = vld [vmem:[%s217 + $0x38] sm:$0x1]
        %v237 = vrot.slane %v222, 7
        %vm238 = vcmask 1041409
        %v239 = vsel %vm238, %v237, %v221
        %v240 = vrot.slane %v223, 6
        %vm241 = vcmask 1042434
        %v242 = vsel %vm241, %v240, %v239
        %v243 = vrot.slane %v224, 5
        %vm244 = vcmask 1043459
        %v245 = vsel %vm244, %v243, %v242
        %v246 = vrot.slane %v225, 4
        %vm247 = vcmask 1044484
        %v248 = vsel %vm247, %v246, %v245
        %v249 = vrot.slane %v226, 3
        %vm250 = vcmask 1045509
        %v251 = vsel %vm250, %v249, %v248
        %v252 = vrot.slane %v227, 2
        %vm253 = vcmask 1046534
        %v254 = vsel %vm253, %v252, %v251
        %v255 = vrot.slane %v228, 1
        %vm256 = vcmask 1047559
        %v257 = vsel %vm256, %v255, %v254
        %vm259 = vcmask 818176
        %v260 = vsel %vm259, %v257, -inf
        %261 = vmax.xlane.f32.xlu0 %v260
        %v262 = vpop.xlane.xlu0 %261
        %v264 = vrot.slane %v262, 1
        %v265 = vrot.slane %v262, 2
        %v266 = vrot.slane %v262, 3
        %v267 = vrot.slane %v262, 4
        %v268 = vrot.slane %v262, 5
        %v269 = vrot.slane %v262, 6
        %v270 = vrot.slane %v262, 7
        %vm279 = vcmp.eq.f32.partialorder %v221, %v262
        %vm280 = vcmp.eq.f32.partialorder %v222, %v264
        %vm281 = vcmp.eq.f32.partialorder %v223, %v265
        %vm282 = vcmp.eq.f32.partialorder %v224, %v266
        %vm283 = vcmp.eq.f32.partialorder %v225, %v267
        %vm284 = vcmp.eq.f32.partialorder %v226, %v268
        %vm285 = vcmp.eq.f32.partialorder %v227, %v269
        %vm286 = vcmp.eq.f32.partialorder %v228, %v270
        %v287 = vsel %vm279, %v220, 100
        %v288 = vsel %vm280, %v220, 100
        %v289 = vsel %vm281, %v220, 100
        %v290 = vsel %vm282, %v220, 100
        %v291 = vsel %vm283, %v220, 100
        %v292 = vsel %vm284, %v220, 100
        %v293 = vsel %vm285, %v220, 100
        %v294 = vsel %vm286, %v220, 100
        %v295 = vrot.slane %v288, 7
        %v296 = vsel %vm238, %v295, %v287
        %v297 = vrot.slane %v289, 6
        %v298 = vsel %vm241, %v297, %v296
        %v299 = vrot.slane %v290, 5
        %v300 = vsel %vm244, %v299, %v298
        %v301 = vrot.slane %v291, 4
        %v302 = vsel %vm247, %v301, %v300
        %v303 = vrot.slane %v292, 3
        %v304 = vsel %vm250, %v303, %v302
        %v305 = vrot.slane %v293, 2
        %v306 = vsel %vm253, %v305, %v304
        %v307 = vrot.slane %v294, 1
        %v308 = vsel %vm256, %v307, %v306
        %v309 = vsel %vm259, %v308, 2147483647
        %v310 = vand.u32 %v309, 65535
        %v311 = vshra.s32 %v309, 16
        %v312 = vcvt.s32.f32 %v310
        %v313 = vcvt.s32.f32 %v311
        %314 = vmin.xlane.f32.xlu0 %v313
        %v315 = vpop.xlane.xlu0 %314
        %vm316 = vcmp.eq.f32.partialorder %v313, %v315
        %v317 = vsel %vm316, %v312, inf
        %318 = vmin.xlane.f32.xlu0 %v317
        %v319 = vpop.xlane.xlu0 %318
        %v320 = vcvt.f32.s32 %v319
        %v321 = vcvt.f32.s32 %v315
        %v322 = vshll.u32 %v321, 16
        %v323 = vadd.s32 %v322, %v320
        %v324 = vlaneseq
        %v325 = vshrl.u32 %v324, 7
        %v326 = vsub.s32 %v220, %v325
        %v327 = vrot.slane %v323, %v326
        %vm328 = vcmask 57344
        %329 = vst.msk [vmem:[%s196] sm:$0x1] %vm328, %v327
        %v330 = vld [vmem:[%s217 + $0x1] sm:$0x1]
        %v331 = vld [vmem:[%s217 + $0x9] sm:$0x1]
        %v332 = vld [vmem:[%s217 + $0x11] sm:$0x1]
        %v333 = vld [vmem:[%s217 + $0x19] sm:$0x1]
        %v334 = vld [vmem:[%s217 + $0x21] sm:$0x1]
        %v335 = vld [vmem:[%s217 + $0x29] sm:$0x1]
        %v336 = vld [vmem:[%s217 + $0x31] sm:$0x1]
        %v337 = vld [vmem:[%s217 + $0x39] sm:$0x1]
        %v346 = vrot.slane %v331, 7
        %v347 = vsel %vm238, %v346, %v330
        %v348 = vrot.slane %v332, 6
        %v349 = vsel %vm241, %v348, %v347
        %v350 = vrot.slane %v333, 5
        %v351 = vsel %vm244, %v350, %v349
        %v352 = vrot.slane %v334, 4
        %v353 = vsel %vm247, %v352, %v351
        %v354 = vrot.slane %v335, 3
        %v355 = vsel %vm250, %v354, %v353
        %v356 = vrot.slane %v336, 2
        %v357 = vsel %vm253, %v356, %v355
        %v358 = vrot.slane %v337, 1
        %v359 = vsel %vm256, %v358, %v357
        %v361 = vsel %vm259, %v359, -inf
        %362 = vmax.xlane.f32.xlu0 %v361
        %v363 = vpop.xlane.xlu0 %362
        %v365 = vrot.slane %v363, 1
        %v366 = vrot.slane %v363, 2
        %v367 = vrot.slane %v363, 3
        %v368 = vrot.slane %v363, 4
        %v369 = vrot.slane %v363, 5
        %v370 = vrot.slane %v363, 6
        %v371 = vrot.slane %v363, 7
        %vm380 = vcmp.eq.f32.partialorder %v330, %v363
        %vm381 = vcmp.eq.f32.partialorder %v331, %v365
        %vm382 = vcmp.eq.f32.partialorder %v332, %v366
        %vm383 = vcmp.eq.f32.partialorder %v333, %v367
        %vm384 = vcmp.eq.f32.partialorder %v334, %v368
        %vm385 = vcmp.eq.f32.partialorder %v335, %v369
        %vm386 = vcmp.eq.f32.partialorder %v336, %v370
        %vm387 = vcmp.eq.f32.partialorder %v337, %v371
        %v388 = vsel %vm380, %v220, 100
        %v389 = vsel %vm381, %v220, 100
        %v390 = vsel %vm382, %v220, 100
        %v391 = vsel %vm383, %v220, 100
        %v392 = vsel %vm384, %v220, 100
        %v393 = vsel %vm385, %v220, 100
        %v394 = vsel %vm386, %v220, 100
        %v395 = vsel %vm387, %v220, 100
        %v396 = vrot.slane %v389, 7
        %v397 = vsel %vm238, %v396, %v388
        %v398 = vrot.slane %v390, 6
        %v399 = vsel %vm241, %v398, %v397
        %v400 = vrot.slane %v391, 5
        %v401 = vsel %vm244, %v400, %v399
        %v402 = vrot.slane %v392, 4
        %v403 = vsel %vm247, %v402, %v401
        %v404 = vrot.slane %v393, 3
        %v405 = vsel %vm250, %v404, %v403
        %v406 = vrot.slane %v394, 2
        %v407 = vsel %vm253, %v406, %v405
        %v408 = vrot.slane %v395, 1
        %v409 = vsel %vm256, %v408, %v407
        %v410 = vsel %vm259, %v409, 2147483647
        %v411 = vand.u32 %v410, 65535
        %v412 = vshra.s32 %v410, 16
        %v413 = vcvt.s32.f32 %v411
        %v414 = vcvt.s32.f32 %v412
        %415 = vmin.xlane.f32.xlu0 %v414
        %v416 = vpop.xlane.xlu0 %415
        %vm417 = vcmp.eq.f32.partialorder %v414, %v416
        %v418 = vsel %vm417, %v413, inf
        %419 = vmin.xlane.f32.xlu0 %v418
        %v420 = vpop.xlane.xlu0 %419
        %v421 = vcvt.f32.s32 %v420
        %v422 = vcvt.f32.s32 %v416
        %v423 = vshll.u32 %v422, 16
        %v424 = vadd.s32 %v423, %v421
        %v425 = vlaneseq
        %v426 = vshrl.u32 %v425, 7
        %v427 = vsub.s32 %v220, %v426
        %v428 = vrot.slane %v424, %v427
        %429 = vst.msk [vmem:[%s196 + $0x1] sm:$0x1] %vm328, %v428
        %v430 = vld [vmem:[%s217 + $0x2] sm:$0x1]
        %v431 = vld [vmem:[%s217 + $0xa] sm:$0x1]
        %v432 = vld [vmem:[%s217 + $0x12] sm:$0x1]
        %v433 = vld [vmem:[%s217 + $0x1a] sm:$0x1]
        %v434 = vld [vmem:[%s217 + $0x22] sm:$0x1]
        %v435 = vld [vmem:[%s217 + $0x2a] sm:$0x1]
        %v436 = vld [vmem:[%s217 + $0x32] sm:$0x1]
        %v437 = vld [vmem:[%s217 + $0x3a] sm:$0x1]
        %v446 = vrot.slane %v431, 7
        %v447 = vsel %vm238, %v446, %v430
        %v448 = vrot.slane %v432, 6
        %v449 = vsel %vm241, %v448, %v447
        %v450 = vrot.slane %v433, 5
        %v451 = vsel %vm244, %v450, %v449
        %v452 = vrot.slane %v434, 4
        %v453 = vsel %vm247, %v452, %v451
        %v454 = vrot.slane %v435, 3
        %v455 = vsel %vm250, %v454, %v453
        %v456 = vrot.slane %v436, 2
        %v457 = vsel %vm253, %v456, %v455
        %v458 = vrot.slane %v437, 1
        %v459 = vsel %vm256, %v458, %v457
        %v461 = vsel %vm259, %v459, -inf
        %462 = vmax.xlane.f32.xlu0 %v461
        %v463 = vpop.xlane.xlu0 %462
        %v465 = vrot.slane %v463, 1
        %v466 = vrot.slane %v463, 2
        %v467 = vrot.slane %v463, 3
        %v468 = vrot.slane %v463, 4
        %v469 = vrot.slane %v463, 5
        %v470 = vrot.slane %v463, 6
        %v471 = vrot.slane %v463, 7
        %vm480 = vcmp.eq.f32.partialorder %v430, %v463
        %vm481 = vcmp.eq.f32.partialorder %v431, %v465
        %vm482 = vcmp.eq.f32.partialorder %v432, %v466
        %vm483 = vcmp.eq.f32.partialorder %v433, %v467
        %vm484 = vcmp.eq.f32.partialorder %v434, %v468
        %vm485 = vcmp.eq.f32.partialorder %v435, %v469
        %vm486 = vcmp.eq.f32.partialorder %v436, %v470
        %vm487 = vcmp.eq.f32.partialorder %v437, %v471
        %v488 = vsel %vm480, %v220, 100
        %v489 = vsel %vm481, %v220, 100
        %v490 = vsel %vm482, %v220, 100
        %v491 = vsel %vm483, %v220, 100
        %v492 = vsel %vm484, %v220, 100
        %v493 = vsel %vm485, %v220, 100
        %v494 = vsel %vm486, %v220, 100
        %v495 = vsel %vm487, %v220, 100
        %v496 = vrot.slane %v489, 7
        %v497 = vsel %vm238, %v496, %v488
        %v498 = vrot.slane %v490, 6
        %v499 = vsel %vm241, %v498, %v497
        %v500 = vrot.slane %v491, 5
        %v501 = vsel %vm244, %v500, %v499
        %v502 = vrot.slane %v492, 4
        %v503 = vsel %vm247, %v502, %v501
        %v504 = vrot.slane %v493, 3
        %v505 = vsel %vm250, %v504, %v503
        %v506 = vrot.slane %v494, 2
        %v507 = vsel %vm253, %v506, %v505
        %v508 = vrot.slane %v495, 1
        %v509 = vsel %vm256, %v508, %v507
        %v510 = vsel %vm259, %v509, 2147483647
        %v511 = vand.u32 %v510, 65535
        %v512 = vshra.s32 %v510, 16
        %v513 = vcvt.s32.f32 %v511
        %v514 = vcvt.s32.f32 %v512
        %515 = vmin.xlane.f32.xlu0 %v514
        %v516 = vpop.xlane.xlu0 %515
        %vm517 = vcmp.eq.f32.partialorder %v514, %v516
        %v518 = vsel %vm517, %v513, inf
        %519 = vmin.xlane.f32.xlu0 %v518
        %v520 = vpop.xlane.xlu0 %519
        %v521 = vcvt.f32.s32 %v520
        %v522 = vcvt.f32.s32 %v516
        %v523 = vshll.u32 %v522, 16
        %v524 = vadd.s32 %v523, %v521
        %v525 = vlaneseq
        %v526 = vshrl.u32 %v525, 7
        %v527 = vsub.s32 %v220, %v526
        %v528 = vrot.slane %v524, %v527
        %529 = vst.msk [vmem:[%s196 + $0x2] sm:$0x1] %vm328, %v528
        %v530 = vld [vmem:[%s217 + $0x3] sm:$0x1]
        %v531 = vld [vmem:[%s217 + $0xb] sm:$0x1]
        %v532 = vld [vmem:[%s217 + $0x13] sm:$0x1]
        %v533 = vld [vmem:[%s217 + $0x1b] sm:$0x1]
        %v534 = vld [vmem:[%s217 + $0x23] sm:$0x1]
        %v535 = vld [vmem:[%s217 + $0x2b] sm:$0x1]
        %v536 = vld [vmem:[%s217 + $0x33] sm:$0x1]
        %v537 = vld [vmem:[%s217 + $0x3b] sm:$0x1]
        %v546 = vrot.slane %v531, 7
        %v547 = vsel %vm238, %v546, %v530
        %v548 = vrot.slane %v532, 6
        %v549 = vsel %vm241, %v548, %v547
        %v550 = vrot.slane %v533, 5
        %v551 = vsel %vm244, %v550, %v549
        %v552 = vrot.slane %v534, 4
        %v553 = vsel %vm247, %v552, %v551
        %v554 = vrot.slane %v535, 3
        %v555 = vsel %vm250, %v554, %v553
        %v556 = vrot.slane %v536, 2
        %v557 = vsel %vm253, %v556, %v555
        %v558 = vrot.slane %v537, 1
        %v559 = vsel %vm256, %v558, %v557
        %v561 = vsel %vm259, %v559, -inf
        %562 = vmax.xlane.f32.xlu0 %v561
        %v563 = vpop.xlane.xlu0 %562
        %v565 = vrot.slane %v563, 1
        %v566 = vrot.slane %v563, 2
        %v567 = vrot.slane %v563, 3
        %v568 = vrot.slane %v563, 4
        %v569 = vrot.slane %v563, 5
        %v570 = vrot.slane %v563, 6
        %v571 = vrot.slane %v563, 7
        %vm580 = vcmp.eq.f32.partialorder %v530, %v563
        %vm581 = vcmp.eq.f32.partialorder %v531, %v565
        %vm582 = vcmp.eq.f32.partialorder %v532, %v566
        %vm583 = vcmp.eq.f32.partialorder %v533, %v567
        %vm584 = vcmp.eq.f32.partialorder %v534, %v568
        %vm585 = vcmp.eq.f32.partialorder %v535, %v569
        %vm586 = vcmp.eq.f32.partialorder %v536, %v570
        %vm587 = vcmp.eq.f32.partialorder %v537, %v571
        %v588 = vsel %vm580, %v220, 100
        %v589 = vsel %vm581, %v220, 100
        %v590 = vsel %vm582, %v220, 100
        %v591 = vsel %vm583, %v220, 100
        %v592 = vsel %vm584, %v220, 100
        %v593 = vsel %vm585, %v220, 100
        %v594 = vsel %vm586, %v220, 100
        %v595 = vsel %vm587, %v220, 100
        %v596 = vrot.slane %v589, 7
        %v597 = vsel %vm238, %v596, %v588
        %v598 = vrot.slane %v590, 6
        %v599 = vsel %vm241, %v598, %v597
        %v600 = vrot.slane %v591, 5
        %v601 = vsel %vm244, %v600, %v599
        %v602 = vrot.slane %v592, 4
        %v603 = vsel %vm247, %v602, %v601
        %v604 = vrot.slane %v593, 3
        %v605 = vsel %vm250, %v604, %v603
        %v606 = vrot.slane %v594, 2
        %v607 = vsel %vm253, %v606, %v605
        %v608 = vrot.slane %v595, 1
        %v609 = vsel %vm256, %v608, %v607
        %v610 = vsel %vm259, %v609, 2147483647
        %v611 = vand.u32 %v610, 65535
        %v612 = vshra.s32 %v610, 16
        %v613 = vcvt.s32.f32 %v611
        %v614 = vcvt.s32.f32 %v612
        %615 = vmin.xlane.f32.xlu0 %v614
        %v616 = vpop.xlane.xlu0 %615
        %vm617 = vcmp.eq.f32.partialorder %v614, %v616
        %v618 = vsel %vm617, %v613, inf
        %619 = vmin.xlane.f32.xlu0 %v618
        %v620 = vpop.xlane.xlu0 %619
        %v621 = vcvt.f32.s32 %v620
        %v622 = vcvt.f32.s32 %v616
        %v623 = vshll.u32 %v622, 16
        %v624 = vadd.s32 %v623, %v621
        %v625 = vlaneseq
        %v626 = vshrl.u32 %v625, 7
        %v627 = vsub.s32 %v220, %v626
        %v628 = vrot.slane %v624, %v627
        %629 = vst.msk [vmem:[%s196 + $0x3] sm:$0x1] %vm328, %v628
        %v630 = vld [vmem:[%s217 + $0x4] sm:$0x1]
        %v631 = vld [vmem:[%s217 + $0xc] sm:$0x1]
        %v632 = vld [vmem:[%s217 + $0x14] sm:$0x1]
        %v633 = vld [vmem:[%s217 + $0x1c] sm:$0x1]
        %v634 = vld [vmem:[%s217 + $0x24] sm:$0x1]
        %v635 = vld [vmem:[%s217 + $0x2c] sm:$0x1]
        %v636 = vld [vmem:[%s217 + $0x34] sm:$0x1]
        %v637 = vld [vmem:[%s217 + $0x3c] sm:$0x1]
        %v646 = vrot.slane %v631, 7
        %v647 = vsel %vm238, %v646, %v630
        %v648 = vrot.slane %v632, 6
        %v649 = vsel %vm241, %v648, %v647
        %v650 = vrot.slane %v633, 5
        %v651 = vsel %vm244, %v650, %v649
        %v652 = vrot.slane %v634, 4
        %v653 = vsel %vm247, %v652, %v651
        %v654 = vrot.slane %v635, 3
        %v655 = vsel %vm250, %v654, %v653
        %v656 = vrot.slane %v636, 2
        %v657 = vsel %vm253, %v656, %v655
        %v658 = vrot.slane %v637, 1
        %v659 = vsel %vm256, %v658, %v657
        %vm661 = vcmask 982816
        %v662 = vsel %vm661, %v659, -inf
        %663 = vmax.xlane.f32.xlu0 %v662
        %v664 = vpop.xlane.xlu0 %663
        %v666 = vrot.slane %v664, 1
        %v667 = vrot.slane %v664, 2
        %v668 = vrot.slane %v664, 3
        %v669 = vrot.slane %v664, 4
        %v670 = vrot.slane %v664, 5
        %v671 = vrot.slane %v664, 6
        %v672 = vrot.slane %v664, 7
        %vm681 = vcmp.eq.f32.partialorder %v630, %v664
        %vm682 = vcmp.eq.f32.partialorder %v631, %v666
        %vm683 = vcmp.eq.f32.partialorder %v632, %v667
        %vm684 = vcmp.eq.f32.partialorder %v633, %v668
        %vm685 = vcmp.eq.f32.partialorder %v634, %v669
        %vm686 = vcmp.eq.f32.partialorder %v635, %v670
        %vm687 = vcmp.eq.f32.partialorder %v636, %v671
        %vm688 = vcmp.eq.f32.partialorder %v637, %v672
        %689 = vrot.lane.b32.xlu0 %v220, 100
        %v690 = vpop.permute.xlu0 %689
        %v691 = vsel %vm681, %v690, 20
        %v692 = vsel %vm682, %v690, 20
        %v693 = vsel %vm683, %v690, 20
        %v694 = vsel %vm684, %v690, 20
        %v695 = vsel %vm685, %v690, 20
        %v696 = vsel %vm686, %v690, 20
        %v697 = vsel %vm687, %v690, 20
        %v698 = vsel %vm688, %v690, 20
        %v699 = vrot.slane %v692, 7
        %v700 = vsel %vm238, %v699, %v691
        %v701 = vrot.slane %v693, 6
        %v702 = vsel %vm241, %v701, %v700
        %v703 = vrot.slane %v694, 5
        %v704 = vsel %vm244, %v703, %v702
        %v705 = vrot.slane %v695, 4
        %v706 = vsel %vm247, %v705, %v704
        %v707 = vrot.slane %v696, 3
        %v708 = vsel %vm250, %v707, %v706
        %v709 = vrot.slane %v697, 2
        %v710 = vsel %vm253, %v709, %v708
        %v711 = vrot.slane %v698, 1
        %v712 = vsel %vm256, %v711, %v710
        %v713 = vsel %vm661, %v712, 2147483647
        %v714 = vand.u32 %v713, 65535
        %v715 = vshra.s32 %v713, 16
        %v716 = vcvt.s32.f32 %v714
        %v717 = vcvt.s32.f32 %v715
        %718 = vmin.xlane.f32.xlu0 %v717
        %v719 = vpop.xlane.xlu0 %718
        %vm720 = vcmp.eq.f32.partialorder %v717, %v719
        %v721 = vsel %vm720, %v716, inf
        %722 = vmin.xlane.f32.xlu0 %v721
        %v723 = vpop.xlane.xlu0 %722
        %v724 = vcvt.f32.s32 %v723
        %v725 = vcvt.f32.s32 %v719
        %v726 = vshll.u32 %v725, 16
        %v727 = vadd.s32 %v726, %v724
        %728 = vmax.xlane.f32.xlu0 %v659
        %v729 = vpop.xlane.xlu0 %728
        %v731 = vrot.slane %v729, 1
        %v732 = vrot.slane %v729, 2
        %v733 = vrot.slane %v729, 3
        %v734 = vrot.slane %v729, 4
        %v735 = vrot.slane %v729, 5
        %v736 = vrot.slane %v729, 6
        %v737 = vrot.slane %v729, 7
        %v746 = vsub.f32 %v630, %v729
        %v747 = vsub.f32 %v631, %v731
        %v748 = vsub.f32 %v632, %v732
        %v749 = vsub.f32 %v633, %v733
        %v750 = vsub.f32 %v634, %v734
        %v751 = vsub.f32 %v635, %v735
        %v752 = vsub.f32 %v636, %v736
        %v753 = vsub.f32 %v637, %v737
        %v754 = vmul.f32 %v746, 1.442695
        %v755 = vpow.pop %v754
        %v756 = vmul.f32 %v747, 1.442695
        %v757 = vpow.pop %v756
        %v758 = vmul.f32 %v748, 1.442695
        %v759 = vpow.pop %v758
        %v760 = vmul.f32 %v749, 1.442695
        %v761 = vpow.pop %v760
        %v762 = vmul.f32 %v750, 1.442695
        %v763 = vpow.pop %v762
        %v764 = vmul.f32 %v751, 1.442695
        %v765 = vpow.pop %v764
        %v766 = vmul.f32 %v752, 1.442695
        %v767 = vpow.pop %v766
        %v768 = vmul.f32 %v753, 1.442695
        %v769 = vpow.pop %v768
        %v778 = vrot.slane %v757, 7
        %v779 = vsel %vm238, %v778, %v755
        %v780 = vrot.slane %v759, 6
        %v781 = vsel %vm241, %v780, %v779
        %v782 = vrot.slane %v761, 5
        %v783 = vsel %vm244, %v782, %v781
        %v784 = vrot.slane %v763, 4
        %v785 = vsel %vm247, %v784, %v783
        %v786 = vrot.slane %v765, 3
        %v787 = vsel %vm250, %v786, %v785
        %v788 = vrot.slane %v767, 2
        %v789 = vsel %vm253, %v788, %v787
        %v790 = vrot.slane %v769, 1
        %v791 = vsel %vm256, %v790, %v789
        %793 = vadd.xlane.f32.xlu0 %v791
        %v794 = vpop.xlane.xlu0 %793
        %v795 = vsub.f32 %v664, %v729
        %v796 = vmul.f32 %v795, 1.442695
        %v797 = vpow.pop %v796
        %v798 = vrcp.pop %v794
        %v799 = vmul.f32 %v797, %v798
        %v801 = vlaneseq
        %v802 = vshrl.u32 %v801, 7
        %v803 = vsub.s32 %v220, %v802
        %v804 = vrot.slane %v799, %v803
        %806 = vst.msk [vmem:[%s202] sm:$0x1] %vm328, %v804
        %v807 = vlaneseq
        %v808 = vshrl.u32 %v807, 7
        %v809 = vsub.s32 %v220, %v808
        %v810 = vrot.slane %v727, %v809
        %811 = vst.msk [vmem:[%s208] sm:$0x1] %vm328, %v810
        %s812 = sand.u32 %s71, 1
        %s813 = scalar_lea.sflag [#allocation3], %s812
        %s814 = sand.u32 %s71, 1
        %s815 = smul.addr %s814, 4
        %s816 = scalar_lea.vmem [#allocation2], %s815
        %s817 = sand.u32 %s21, 1
        %s818 = scalar_lea.sflag [#allocation5], %s817
        %s819 = sand.u32 %s99, 1
        %s820 = scalar_lea.vmem [#allocation4], %s819
        %s821 = sand.u32 %s21, 1
        %s822 = scalar_lea.sflag [#allocation5], %s821
        %s823 = sand.u32 %s127, 1
        %s824 = scalar_lea.vmem [#allocation6], %s823
        // Predicated region
        $region25: #{tpu_custom_call.1} parent=23 // pred_check
          %p825 = pneg %p81
        $region26: #{tpu_custom_call.1} parent=23 // pred_check_branch
          %827 = sbr.rel (%p825) target = $region28
        $region27: #{tpu_custom_call.1} parent=23 // pred_region
          %s829 = ssub.s32 64, 64
          %830 = vsyncadd %s813, %s829
          %s831 = sadd.s32 %s26, %s25
          %s832 = smul.addr %s831, 64
          %s833 = scalar_lea.hbm %s1, %s832
          %s835 = sshll.u32 %s816, 4
          %s836 = int_to_ptr.vmem [resolvable:$true] %s835
          %838 = dma.vmem_to_hbm [thread:$0]  %s836, 64, %s833, %s813
        $region28: #{tpu_custom_call.1} parent=23 // pred_fallthru
          _
        // Predicated region
        $region29: #{tpu_custom_call.1} parent=23 // pred_check
          %p839 = pneg %p109
        $region30: #{tpu_custom_call.1} parent=23 // pred_check_branch
          %841 = sbr.rel (%p839) target = $region32
        $region31: #{tpu_custom_call.1} parent=23 // pred_region
          %s843 = ssub.s32 16, 16
          %844 = vsyncadd %s818, %s843
          %s845 = sadd.s32 %s26, %s25
          %s846 = smul.addr %s845, 16
          %s847 = scalar_lea.hbm %s2, %s846
          %s849 = sshll.u32 %s820, 4
          %s850 = int_to_ptr.vmem [resolvable:$true] %s849
          %852 = dma.vmem_to_hbm [thread:$0]  %s850, 16, %s847, %s818
        $region32: #{tpu_custom_call.1} parent=23 // pred_fallthru
          _
        // Predicated region
        $region33: #{tpu_custom_call.1} parent=23 // pred_check
          %p853 = pneg %p137
        $region34: #{tpu_custom_call.1} parent=23 // pred_check_branch
          %855 = sbr.rel (%p853) target = $region36
        $region35: #{tpu_custom_call.1} parent=23 // pred_region
          %s857 = ssub.s32 16, 16
          %858 = vsyncadd %s822, %s857
          %s859 = sadd.s32 %s26, %s25
          %s860 = smul.addr %s859, 16
          %s861 = scalar_lea.hbm %s3, %s860
          %s863 = sshll.u32 %s824, 4
          %s864 = int_to_ptr.vmem [resolvable:$true] %s863
          %866 = dma.vmem_to_hbm [thread:$0]  %s864, 16, %s861, %s822
        $region36: #{tpu_custom_call.1} parent=23 // pred_fallthru
          _
      $region24: #{tpu_custom_call.1} parent=5 // pred_fallthru
        _
      %p867 = scmp.le.s32.totalorder 2, %s16
      // Predicated region
      $region37: #{tpu_custom_call.1} parent=5 // pred_check
        %p868 = pneg %p867
      $region38: #{tpu_custom_call.1} parent=5 // pred_check_branch
        %870 = sbr.rel (%p868) target = $region40
      $region39: #{tpu_custom_call.1} parent=5 // pred_region
        %s871 = ssub.s32 %s16, 2
        // Predicated region
        $region41: #{tpu_custom_call.1} parent=39 // pred_check
          %p872 = pneg %p87
        $region42: #{tpu_custom_call.1} parent=39 // pred_check_branch
          %874 = sbr.rel (%p872) target = $region44
        $region43: #{tpu_custom_call.1} parent=39 // pred_region
          %s875 = sand.u32 %s72, 1
          %s876 = scalar_lea.sflag [#allocation3], %s875
          %s877 = sand.u32 %s72, 1
          %s878 = smul.addr %s877, 4
          %s879 = scalar_lea.vmem [#allocation2], %s878
          %880 = dma.done %s876, 64
        $region44: #{tpu_custom_call.1} parent=39 // pred_fallthru
          _
        // Predicated region
        $region45: #{tpu_custom_call.1} parent=39 // pred_check
          %p881 = pneg %p115
        $region46: #{tpu_custom_call.1} parent=39 // pred_check_branch
          %883 = sbr.rel (%p881) target = $region48
        $region47: #{tpu_custom_call.1} parent=39 // pred_region
          %s884 = sand.u32 %s22, 1
          %s885 = scalar_lea.sflag [#allocation5], %s884
          %s886 = sand.u32 %s100, 1
          %s887 = scalar_lea.vmem [#allocation4], %s886
          %888 = dma.done %s885, 16
        $region48: #{tpu_custom_call.1} parent=39 // pred_fallthru
          _
        // Predicated region
        $region49: #{tpu_custom_call.1} parent=39 // pred_check
          %p889 = pneg %p143
        $region50: #{tpu_custom_call.1} parent=39 // pred_check_branch
          %891 = sbr.rel (%p889) target = $region52
        $region51: #{tpu_custom_call.1} parent=39 // pred_region
          %s892 = sand.u32 %s22, 1
          %s893 = scalar_lea.sflag [#allocation5], %s892
          %s894 = sand.u32 %s128, 1
          %s895 = scalar_lea.vmem [#allocation6], %s894
          %896 = dma.done %s893, 16
        $region52: #{tpu_custom_call.1} parent=39 // pred_fallthru
          _
      $region40: #{tpu_custom_call.1} parent=5 // pred_fallthru
        _
    $region6: #{tpu_custom_call.1} parent=1 // loop_footer
      %s20 = sadd.s32 1, %s16
    $region7: #{tpu_custom_call.1} parent=1 // loop_footer_branch
      %15 = sbr.rel target = $region3
    $region8: #{tpu_custom_call.1} parent=1 // loop_exit
      _
    %897 = vsyncpa [#allocation3], 1
    %s898 = scalar_lea.sflag [#allocation3], 1
    %899 = vsyncpa %s898, 1
    %900 = vsyncpa [#allocation5], 1
    %s901 = scalar_lea.sflag [#allocation5], 1
    %902 = vsyncpa %s901, 1

</llo_original>
